<compile_context>
chip_gen: v7x
topology: tpu7x:2x2x1
jax: 0.10.0
libtpu: 0.0.40
codegen_flags: <defaults>
</compile_context>

<pallas_src>
import jax
import jax.numpy as jnp
from jax.experimental import pallas as pl
from jax.experimental.pallas import tpu as pltpu


def _score_kernel(z2_ref, w1b_ref, b1_ref, out_ref):
    """z2: (tn, M*D) f32; w1b: (M*D, M*H) f32/bf16; b1: (1, M*H) f32; out: (1,1,M*H)."""
    zc = z2_ref[...].astype(w1b_ref.dtype)
    h = jnp.tanh(
        jnp.dot(zc, w1b_ref[...], preferred_element_type=jnp.float32) + b1_ref[...])
    # reduce-then-project: node-sum here, W2 projection wrapper-side (they commute).
    out_ref[...] = jnp.sum(h, axis=0, keepdims=True).reshape(out_ref.shape)


def _wsum_kernel(zg_ref, b_ref, out_ref):
    """zg: (tg, G*M*D) f32; b: (G*M*D, G*D) f32 -> lane-dense (tg, G*D) output."""
    out_ref[...] = jnp.dot(
        zg_ref[...], b_ref[...], preferred_element_type=jnp.float32
    ).astype(out_ref.dtype)


def _vmem_capacity_bytes(default=64 * 1024 * 1024):
    try:
        return int(pltpu.get_tpu_info().vmem_capacity_bytes)
    except Exception:
        return default  # conservative (v7x-sized) fallback


def _round_up(x, m):
    return ((x + m - 1) // m) * m


def _pick_tn(M, D, H, G, vmem_limit, score_itemsize, max_rows):
    """Largest node tile that keeps BOTH passes inside the scoped VMEM budget."""
    f32 = 4
    # Constant-index_map operands are still double-buffered by the default
    # pipeline, so they are charged twice here.
    # TODO(synk): pipeline_mode=pl.Buffered(1) on the resident weights would
    # reclaim that second buffer; kept default (and budgeted) to avoid lowering risk.
    fixed_score = 2 * ((M * D) * (M * H) * score_itemsize   # kron(I_M, W1)
                       + (M * H) * f32                      # tiled bias
                       + (M * H) * f32)                     # (1,1,M*H) out block
    per_row_score = (2 * (M * D) * f32                      # z block, double-buffered
                     + (M * H) * f32                        # tanh intermediate
                     + (M * D) * score_itemsize)            # bf16/f32 cast copy
    fixed_wsum = 2 * (G * M * D) * (G * D) * f32            # kron(I_G, B)
    per_row_wsum = (2 * (M * D) * f32                       # z block, double-buffered
                    + 2 * D * f32                           # out block, double-buffered
                    + D * f32)                              # matmul result copy
    budget = (3 * vmem_limit) // 4                          # headroom under scoped limit
    cap = min((budget - fixed_score) // per_row_score,
              (budget - fixed_wsum) // per_row_wsum,
              max_rows)
    # TODO(synk): if the kron weights alone exceed the budget (huge M*H) a
    # K-tiled score pass would be needed; clamp keeps us compiling meanwhile.
    cap = max(8 * G, (cap // (8 * G)) * (8 * G))
    return cap


def semantic_attention(z, w1, b1, w2, *, tn=None, score_dtype=jnp.float32):
    """z: (N, M, D); w1: (D, H) (= Linear1.weight^T); b1: (1, H); w2: (1, H)."""
    N, M, D = z.shape
    H = w1.shape[1]
    f32 = jnp.float32

    # Lane-dense output grouping: G rows of D cols -> one row of G*D (=128) cols.
    G = 128 // D if (D < 128 and 128 % D == 0) else 1

    vmem_cap = _vmem_capacity_bytes()
    vmem_limit = (3 * vmem_cap) // 4
    max_rows = 16384 if vmem_cap >= 96 * 1024 * 1024 else 8192   # v5e/v6e vs v7x
    score_itemsize = jnp.dtype(score_dtype).itemsize
    if tn is None:
        tn = _pick_tn(M, D, H, G, vmem_limit, score_itemsize, max_rows)
    else:
        assert tn % (8 * G) == 0, f"tn must be a multiple of {8 * G}"
    tn = min(tn, _round_up(N, 8 * G))
    Np = _round_up(N, tn)            # pad instead of requiring N % tn == 0
    n_pad = Np - N
    T = Np // tn

    z2 = z.reshape(N, M * D).astype(f32)              # lane-dense node stream
    if n_pad:
        z2 = jnp.concatenate([z2, jnp.zeros((n_pad, M * D), f32)], axis=0)

    eye_m = jnp.eye(M, dtype=f32)
    w1_blk = jnp.kron(eye_m, w1.astype(f32)).astype(score_dtype)   # (M*D, M*H)
    b1_t = jnp.tile(b1.astype(f32).reshape(1, H), (1, M))          # (1, M*H)

    cparams = pltpu.CompilerParams(
        dimension_semantics=("parallel",),     # megacore-shard node tiles on v7x
        vmem_limit_bytes=vmem_limit,
    )

    # ---- pass 1: per-tile node-sums of tanh(Linear1(z)), lane-dense output ----
    partials = pl.pallas_call(
        _score_kernel,
        out_shape=jax.ShapeDtypeStruct((T, 1, M * H), f32),
        grid=(T,),
        in_specs=[
            pl.BlockSpec((tn, M * D), lambda i: (i, 0)),
            pl.BlockSpec((M * D, M * H), lambda i: (0, 0)),
            pl.BlockSpec((1, M * H), lambda i: (0, 0)),
        ],
        out_specs=pl.BlockSpec((1, 1, M * H), lambda i: (i, 0, 0)),
        compiler_params=cparams,
    )(z2, w1_blk, b1_t)

    # Tiny combine in the XLA graph: sum tiles, undo the zero-row padding exactly
    # (padded rows each contributed tanh(b1)), project with W2, mean, softmax.
    hsum = jnp.sum(partials, axis=(0, 1))                              # (M*H,)
    if n_pad:
        hsum = hsum - n_pad * jnp.tanh(b1_t[0])
    scores = (hsum.reshape(M, H) @ w2.astype(f32).reshape(H)) / N      # (M,)
    beta = jax.nn.softmax(scores)

    # Beta-weighted stacked identity (hoisted out of the kernel), G-fold grouped.
    b_mat = (beta[:, None, None] * jnp.eye(D, dtype=f32)).reshape(M * D, D)
    b_grp = jnp.kron(jnp.eye(G, dtype=f32), b_mat)                     # (G*M*D, G*D)

    # ---- pass 2: lane-dense beta-weighted sum over metapaths ----
    zg = z2.reshape(Np // G, G * M * D)
    tg = tn // G
    out_g = pl.pallas_call(
        _wsum_kernel,
        out_shape=jax.ShapeDtypeStruct((Np // G, G * D), f32),
        grid=(T,),
        in_specs=[
            pl.BlockSpec((tg, G * M * D), lambda i: (i, 0)),
            pl.BlockSpec((G * M * D, G * D), lambda i: (0, 0)),
        ],
        out_specs=pl.BlockSpec((tg, G * D), lambda i: (i, 0)),
        compiler_params=cparams,
    )(zg, b_grp)

    return out_g.reshape(Np, D)[:N].astype(z.dtype)


def semantic_attention_ref(z, w1, b1, w2):
    """Pure-JAX reference mirroring the PyTorch forward."""
    s = jnp.tanh(z @ w1 + b1[0]) @ w2[0]          # (N, M)
    w = s.mean(axis=0)                            # (M,)
    beta = jax.nn.softmax(w)                      # (M,)
    return (beta[None, :, None] * z).sum(axis=1)  # (N, D)


if __name__ == "__main__":
    N, M, D, H = 256, 4, 32, 32   # nodes, metapaths, in_size, hidden_size

    key = jax.random.PRNGKey(0)
    k1, k2, k3, kz = jax.random.split(key, 4)

    # Deterministic parameter init matching nn.init.xavier_normal_(gain=1.414).
    gain = 1.414
    std1 = gain * (2.0 / (D + H)) ** 0.5          # Linear(in_size, hidden)
    std2 = gain * (2.0 / (H + 1)) ** 0.5          # Linear(hidden, 1, bias=False)
    w1 = std1 * jax.random.normal(k1, (D, H), jnp.float32)   # stored as weight^T
    w2 = std2 * jax.random.normal(k2, (1, H), jnp.float32)
    bound = 1.0 / (D ** 0.5)                      # PyTorch default Linear bias init
    b1 = jax.random.uniform(k3, (1, H), jnp.float32, minval=-bound, maxval=bound)

    z = jax.random.normal(kz, (N, M, D), jnp.float32)
    ref = semantic_attention_ref(z, w1, b1, w2)

    # Auto-sized tile (single tile at these shapes).
    out = jax.block_until_ready(semantic_attention(z, w1, b1, w2))
    assert out.shape == (N, D)
    assert jnp.allclose(out, ref, rtol=1e-5, atol=1e-5), "mismatch vs reference (auto tile)"

    # Forced small tile: exercises multi-tile streaming + wrapper-side combine.
    out2 = jax.block_until_ready(semantic_attention(z, w1, b1, w2, tn=64))
    assert jnp.allclose(out2, ref, rtol=1e-5, atol=1e-5), "mismatch vs reference (tn=64)"

    # Ragged N: exercises the zero-padding path + exact score correction.
    zr = z[: N - 6]
    refr = semantic_attention_ref(zr, w1, b1, w2)
    out3 = jax.block_until_ready(semantic_attention(zr, w1, b1, w2, tn=64))
    assert jnp.allclose(out3, refr, rtol=1e-5, atol=1e-5), "mismatch vs reference (padded N)"

    # bf16 score operands (recommended on v5e); weighted-sum pass stays f32.
    out4 = jax.block_until_ready(
        semantic_attention(z, w1, b1, w2, score_dtype=jnp.bfloat16))
    assert jnp.allclose(out4, ref, rtol=3e-2, atol=3e-2), "mismatch vs reference (bf16 scores)"

    print("KERNEL_OK")
</pallas_src>

<mosaic_0001>
module attributes {stable_mosaic.version = 11 : i64} {
  func.func @_score_kernel(%arg0: i32, %arg1: memref<256x128xf32, #tpu.memory_space<vmem>>, %arg2: memref<128x128xf32, #tpu.memory_space<vmem>>, %arg3: memref<1x128xf32, #tpu.memory_space<vmem>>, %arg4: memref<1x1x128xf32, #tpu.memory_space<vmem>>) attributes {dimension_semantics = [#tpu.dimension_semantics<parallel>], iteration_bounds = array<i64: 1>, scalar_prefetch = 0 : i64, scratch_operands = 0 : i64, tpu.core_type = #tpu.core_type<tc>, window_params = [{transform_indices = @transform_0, window_bounds = array<i64: 256, 128>}, {pipeline_mode = #tpu.pipeline_mode<synchronous>, transform_indices = @transform_1, window_bounds = array<i64: 128, 128>}, {pipeline_mode = #tpu.pipeline_mode<synchronous>, transform_indices = @transform_2, window_bounds = array<i64: 1, 128>}, {transform_indices = @transform_3, window_bounds = array<i64: 1, 1, 128>}]} {
    %c0 = arith.constant 0 : index
    %c0_0 = arith.constant 0 : index
    %0 = vector.load %arg1[%c0, %c0_0] : memref<256x128xf32, #tpu.memory_space<vmem>>, vector<256x128xf32>
    %c0_1 = arith.constant 0 : index
    %c0_2 = arith.constant 0 : index
    %1 = vector.load %arg2[%c0_1, %c0_2] : memref<128x128xf32, #tpu.memory_space<vmem>>, vector<128x128xf32>
    %cst = arith.constant dense<0.000000e+00> : vector<256x128xf32>
    %2 = tpu.matmul %0, %1, %cst {dimension_numbers = #tpu.dot_dimension_numbers<[1], [0], [0], [1], [0, 0, 1, 1], [], []>} : vector<256x128xf32>, vector<128x128xf32>, vector<256x128xf32> -> vector<256x128xf32>
    %c0_3 = arith.constant 0 : index
    %c0_4 = arith.constant 0 : index
    %3 = vector.load %arg3[%c0_3, %c0_4] : memref<1x128xf32, #tpu.memory_space<vmem>>, vector<1x128xf32>
    %4 = vector.broadcast %3 : vector<1x128xf32> to vector<256x128xf32>
    %5 = arith.addf %2, %4 : vector<256x128xf32>
    %6 = math.tanh %5 : vector<256x128xf32>
    %cst_5 = arith.constant dense<0.000000e+00> : vector<128xf32>
    %7 = vector.multi_reduction <add>, %6, %cst_5 [0] : vector<256x128xf32> to vector<128xf32>
    %8 = vector.shape_cast %7 : vector<128xf32> to vector<1x128xf32>
    %9 = vector.shape_cast %8 : vector<1x128xf32> to vector<1x1x128xf32>
    %c0_6 = arith.constant 0 : index
    %c0_7 = arith.constant 0 : index
    %c0_8 = arith.constant 0 : index
    %10 = vector.load %arg4[%c0_6, %c0_7, %c0_8] : memref<1x1x128xf32, #tpu.memory_space<vmem>>, vector<1x1x128xf32>
    tpu.vector_store %arg4[%c0_6, %c0_7, %c0_8], %9 {strides = array<i32>} : memref<1x1x128xf32, #tpu.memory_space<vmem>>, vector<1x1x128xf32>,
    return
  }
  func.func @transform_0(%arg0: i32) -> (i32, i32) {
    %c0_i32 = arith.constant 0 : i32
    %c0_i32_0 = arith.constant 0 : i32
    return %arg0, %c0_i32 : i32, i32
  }
  func.func @transform_1(%arg0: i32) -> (i32, i32) {
    %c0_i32 = arith.constant 0 : i32
    %c0_i32_0 = arith.constant 0 : i32
    %c0_i32_1 = arith.constant 0 : i32
    return %c0_i32, %c0_i32_0 : i32, i32
  }
  func.func @transform_2(%arg0: i32) -> (i32, i32) {
    %c0_i32 = arith.constant 0 : i32
    %c0_i32_0 = arith.constant 0 : i32
    %c0_i32_1 = arith.constant 0 : i32
    return %c0_i32, %c0_i32_0 : i32, i32
  }
  func.func @transform_3(%arg0: i32) -> (i32, i32, i32) {
    %c0_i32 = arith.constant 0 : i32
    %c0_i32_0 = arith.constant 0 : i32
    %c0_i32_1 = arith.constant 0 : i32
    return %arg0, %c0_i32, %c0_i32_0 : i32, i32, i32
  }
}

</mosaic_0001>

<llo_original>
// kernel: tpu_custom_call.1
$region0: #{tpu_custom_call.1}
  #allocation0 [shape = 'u32[]', space=smem, size = 0x4, offset = 0x4, fixed_abs, tag = 'smem constant byte address 0x4 - core index']
  #allocation1 [shape = 'u32[144,128]{1,0:T(1,128)}', space=vmem, size = 0x12000, scoped, tag = 'internal scratch']
  %s0 = inlined_call_operand.hbm [shape: f32[256,128], index: 0, kind: input, shape index: {}]
  %s1 = inlined_call_operand.hbm [shape: f32[128,128], index: 1, kind: input, shape index: {}]
  %s2 = inlined_call_operand.vmem [shape: f32[1,128], index: 2, kind: input, shape index: {}]
  %s3 = inlined_call_operand.hbm [shape: f32[1,1,128], index: 3, kind: output, shape index: {}]
  %s4 = sld [smem:[#allocation0]]
  $region30: #{tpu_custom_call.1} parent=0
    _
  %s6 = ssub.s32 1, %s4
  %s7 = scalar_select 0, %s6, %s4
  $region1: #{tpu_custom_call.1} parent=0
    #allocation2 [shape = 'u8[131072]{0}', space=vmem, size = 0x20000, scoped, tag = 'input window, operand 0, single buffered']
    #allocation3 [shape = 's32[1]{0}', space=sflag, size = 0x4, scoped, tag = 'scoped memory for tpu_custom_call.1']
    #allocation4 [shape = 's32[1]{0}', space=sflag, size = 0x4, scoped, tag = 'scoped memory for tpu_custom_call.1']
    #allocation5 [shape = 'u8[65536]{0}', space=vmem, size = 0x10000, scoped, tag = 'input window, operand 1, single buffered']
    #allocation6 [shape = 's32[1]{0}', space=sflag, size = 0x4, scoped, tag = 'scoped memory for tpu_custom_call.1']
    #allocation7 [shape = 'u8[512]{0}', space=vmem, size = 0x400, scoped, tag = 'output window, operand 0, single buffered']
    %8 = vsyncpa [#allocation3], 0
    %9 = vsyncpa [#allocation6], 0
    %10 = vsyncpa [#allocation4], 0
    // Predicated region
    $region2: #{tpu_custom_call.1} parent=1 // pred_check
      _
    $region3: #{tpu_custom_call.1} parent=1 // pred_check_branch
      %12 = sbr.rel (0) target = $region5
    $region4: #{tpu_custom_call.1} parent=1 // pred_region
      %s14 = ssub.s32 4096, 4096
      %15 = vsyncadd [#allocation3], %s14
      %s16 = sshll.u32 [#allocation2], 4
      %s17 = int_to_ptr.vmem [resolvable:$true] %s16
      %22 = dma.hbm_to_vmem [thread:$0]  %s0, 4096, %s17, [#allocation3], 128, 128, 8
    $region5: #{tpu_custom_call.1} parent=1 // pred_fallthru
      _
    // Predicated region
    $region6: #{tpu_custom_call.1} parent=1 // pred_check
      _
    $region7: #{tpu_custom_call.1} parent=1 // pred_check_branch
      %24 = sbr.rel (0) target = $region9
    $region8: #{tpu_custom_call.1} parent=1 // pred_region
      %s26 = ssub.s32 2048, 2048
      %27 = vsyncadd [#allocation6], %s26
      %s28 = sshll.u32 [#allocation5], 4
      %s29 = int_to_ptr.vmem [resolvable:$true] %s28
      %34 = dma.hbm_to_vmem [thread:$0]  %s1, 2048, %s29, [#allocation6], 128, 128, 8
    $region9: #{tpu_custom_call.1} parent=1 // pred_fallthru
      _
    // Predicated region
    $region10: #{tpu_custom_call.1} parent=1 // pred_check
      _
    $region11: #{tpu_custom_call.1} parent=1 // pred_check_branch
      %36 = sbr.rel (0) target = $region13
    $region12: #{tpu_custom_call.1} parent=1 // pred_region
      _
    $region13: #{tpu_custom_call.1} parent=1 // pred_fallthru
      _
    // Predicated region
    $region14: #{tpu_custom_call.1} parent=1 // pred_check
      _
    $region15: #{tpu_custom_call.1} parent=1 // pred_check_branch
      %38 = sbr.rel (0) target = $region17
    $region16: #{tpu_custom_call.1} parent=1 // pred_region
      %39 = dma.done [#allocation3], 4096
    $region17: #{tpu_custom_call.1} parent=1 // pred_fallthru
      _
    // Predicated region
    $region18: #{tpu_custom_call.1} parent=1 // pred_check
      _
    $region19: #{tpu_custom_call.1} parent=1 // pred_check_branch
      %41 = sbr.rel (0) target = $region21
    $region20: #{tpu_custom_call.1} parent=1 // pred_region
      %42 = dma.done [#allocation6], 2048
    $region21: #{tpu_custom_call.1} parent=1 // pred_fallthru
      _
    %v43 = vld [vmem:[#allocation2] sm:$0xff]
    %v44 = vld [vmem:[#allocation2 + $0x8] sm:$0xff]
    %v45 = vld [vmem:[#allocation2 + $0x10] sm:$0xff]
    %v46 = vld [vmem:[#allocation2 + $0x18] sm:$0xff]
    %v47 = vld [vmem:[#allocation2 + $0x20] sm:$0xff]
    %v48 = vld [vmem:[#allocation2 + $0x28] sm:$0xff]
    %v49 = vld [vmem:[#allocation2 + $0x30] sm:$0xff]
    %v50 = vld [vmem:[#allocation2 + $0x38] sm:$0xff]
    %v51 = vld [vmem:[#allocation2 + $0x40] sm:$0xff]
    %v52 = vld [vmem:[#allocation2 + $0x48] sm:$0xff]
    %v53 = vld [vmem:[#allocation2 + $0x50] sm:$0xff]
    %v54 = vld [vmem:[#allocation2 + $0x58] sm:$0xff]
    %v55 = vld [vmem:[#allocation2 + $0x60] sm:$0xff]
    %v56 = vld [vmem:[#allocation2 + $0x68] sm:$0xff]
    %v57 = vld [vmem:[#allocation2 + $0x70] sm:$0xff]
    %v58 = vld [vmem:[#allocation2 + $0x78] sm:$0xff]
    %v59 = vld [vmem:[#allocation2 + $0x80] sm:$0xff]
    %v60 = vld [vmem:[#allocation2 + $0x88] sm:$0xff]
    %v61 = vld [vmem:[#allocation2 + $0x90] sm:$0xff]
    %v62 = vld [vmem:[#allocation2 + $0x98] sm:$0xff]
    %v63 = vld [vmem:[#allocation2 + $0xa0] sm:$0xff]
    %v64 = vld [vmem:[#allocation2 + $0xa8] sm:$0xff]
    %v65 = vld [vmem:[#allocation2 + $0xb0] sm:$0xff]
    %v66 = vld [vmem:[#allocation2 + $0xb8] sm:$0xff]
    %v67 = vld [vmem:[#allocation2 + $0xc0] sm:$0xff]
    %v68 = vld [vmem:[#allocation2 + $0xc8] sm:$0xff]
    %v69 = vld [vmem:[#allocation2 + $0xd0] sm:$0xff]
    %v70 = vld [vmem:[#allocation2 + $0xd8] sm:$0xff]
    %v71 = vld [vmem:[#allocation2 + $0xe0] sm:$0xff]
    %v72 = vld [vmem:[#allocation2 + $0xe8] sm:$0xff]
    %v73 = vld [vmem:[#allocation2 + $0xf0] sm:$0xff]
    %v74 = vld [vmem:[#allocation2 + $0xf8] sm:$0xff]
    %v75 = vld [vmem:[#allocation5] sm:$0xff]
    %v76 = vld [vmem:[#allocation5 + $0x8] sm:$0xff]
    %v77 = vld [vmem:[#allocation5 + $0x10] sm:$0xff]
    %v78 = vld [vmem:[#allocation5 + $0x18] sm:$0xff]
    %v79 = vld [vmem:[#allocation5 + $0x20] sm:$0xff]
    %v80 = vld [vmem:[#allocation5 + $0x28] sm:$0xff]
    %v81 = vld [vmem:[#allocation5 + $0x30] sm:$0xff]
    %v82 = vld [vmem:[#allocation5 + $0x38] sm:$0xff]
    %v83 = vld [vmem:[#allocation5 + $0x40] sm:$0xff]
    %v84 = vld [vmem:[#allocation5 + $0x48] sm:$0xff]
    %v85 = vld [vmem:[#allocation5 + $0x50] sm:$0xff]
    %v86 = vld [vmem:[#allocation5 + $0x58] sm:$0xff]
    %v87 = vld [vmem:[#allocation5 + $0x60] sm:$0xff]
    %v88 = vld [vmem:[#allocation5 + $0x68] sm:$0xff]
    %v89 = vld [vmem:[#allocation5 + $0x70] sm:$0xff]
    %v90 = vld [vmem:[#allocation5 + $0x78] sm:$0xff]
    %v91 = vld [vmem:[%s2] sm:$0x1]
    %v93 = vlaneseq
    %v94 = vshrl.u32 %v93, 7
    %v95 = vsub.s32 0, %v94
    %v96 = vrot.slane %v91, %v95
    %98 = vmatprep.subr.mxu0 0.0
    %99 = vmatpush1.msra.mxu0 %v75
    %100 = vmatprep.subr.mxu0 0.0
    %101 = vmatpush1.msra.mxu0 %v76
    %102 = vmatprep.subr.mxu0 0.0
    %103 = vmatpush1.msra.mxu0 %v77
    %104 = vmatprep.subr.mxu0 0.0
    %105 = vmatpush1.msra.mxu0 %v78
    %106 = vmatprep.subr.mxu0 0.0
    %107 = vmatpush1.msra.mxu0 %v79
    %108 = vmatprep.subr.mxu0 0.0
    %109 = vmatpush1.msra.mxu0 %v80
    %110 = vmatprep.subr.mxu0 0.0
    %111 = vmatpush1.msra.mxu0 %v81
    %112 = vmatprep.subr.mxu0 0.0
    %113 = vmatpush1.msra.mxu0 %v82
    %114 = vmatprep.subr.mxu0 0.0
    %115 = vmatpush1.msra.mxu0 %v83
    %116 = vmatprep.subr.mxu0 0.0
    %117 = vmatpush1.msra.mxu0 %v84
    %118 = vmatprep.subr.mxu0 0.0
    %119 = vmatpush1.msra.mxu0 %v85
    %120 = vmatprep.subr.mxu0 0.0
    %121 = vmatpush1.msra.mxu0 %v86
    %122 = vmatprep.subr.mxu0 0.0
    %123 = vmatpush1.msra.mxu0 %v87
    %124 = vmatprep.subr.mxu0 0.0
    %125 = vmatpush1.msra.mxu0 %v88
    %126 = vmatprep.subr.mxu0 0.0
    %127 = vmatpush1.msra.mxu0 %v89
    %128 = vmatprep.subr.mxu0 0.0
    %129 = vmatpush1.msra.mxu0 %v90
    %130 = vmatprep.subr.mxu0 0.0
    %131 = vmatpush1.msra.mxu0 0.0
    %132 = vmatprep.subr.mxu0 0.0
    %133 = vmatpush1.msra.mxu0 0.0
    %134 = vmatprep.subr.mxu0 0.0
    %135 = vmatpush1.msra.mxu0 0.0
    %136 = vmatprep.subr.mxu0 0.0
    %137 = vmatpush1.msra.mxu0 0.0
    %138 = vmatprep.subr.mxu0 0.0
    %139 = vmatpush1.msra.mxu0 0.0
    %140 = vmatprep.subr.mxu0 0.0
    %141 = vmatpush1.msra.mxu0 0.0
    %142 = vmatprep.subr.mxu0 0.0
    %143 = vmatpush1.msra.mxu0 0.0
    %144 = vmatprep.subr.mxu0 0.0
    %145 = vmatpush1.msra.mxu0 0.0
    %146 = vmatprep.subr.mxu0 0.0
    %147 = vmatpush1.msra.mxu0 0.0
    %148 = vmatprep.subr.mxu0 0.0
    %149 = vmatpush1.msra.mxu0 0.0
    %150 = vmatprep.subr.mxu0 0.0
    %151 = vmatpush1.msra.mxu0 0.0
    %152 = vmatprep.subr.mxu0 0.0
    %153 = vmatpush1.msra.mxu0 0.0
    %154 = vmatprep.subr.mxu0 0.0
    %155 = vmatpush1.msra.mxu0 0.0
    %156 = vmatprep.subr.mxu0 0.0
    %157 = vmatpush1.msra.mxu0 0.0
    %158 = vmatprep.subr.mxu0 0.0
    %159 = vmatpush1.msra.mxu0 0.0
    %160 = vmatprep.subr.mxu0 0.0
    %161 = vmatpush1.msra.mxu0 0.0
    %162 = vmatprep.mubr.f32.mxu0 0.0
    %163 = vmatmul.mubr.f32.gmra.mrb[0].mxu0 %v43
    %v164 = vpop.f32.mrb[0].mxu0
    %v165 = vadd.f32 %v96, %v164
    %v166 = vpop.f32.mrb[0].mxu0
    %167 = vmatprep.mubr.f32.mxu0 0.0
    %168 = vmatmul.mubr.f32.gmra.mrb[0].mxu0 %v44
    %v169 = vpop.f32.mrb[0].mxu0
    %v170 = vadd.f32 %v96, %v169
    %v171 = vpop.f32.mrb[0].mxu0
    %172 = vmatprep.mubr.f32.mxu0 0.0
    %173 = vmatmul.mubr.f32.gmra.mrb[0].mxu0 %v45
    %v174 = vpop.f32.mrb[0].mxu0
    %v175 = vadd.f32 %v96, %v174
    %v176 = vpop.f32.mrb[0].mxu0
    %177 = vmatprep.mubr.f32.mxu0 0.0
    %178 = vmatmul.mubr.f32.gmra.mrb[0].mxu0 %v46
    %v179 = vpop.f32.mrb[0].mxu0
    %v180 = vadd.f32 %v96, %v179
    %v181 = vpop.f32.mrb[0].mxu0
    %182 = vmatprep.mubr.f32.mxu0 0.0
    %183 = vmatmul.mubr.f32.gmra.mrb[0].mxu0 %v47
    %v184 = vpop.f32.mrb[0].mxu0
    %v185 = vadd.f32 %v96, %v184
    %v186 = vpop.f32.mrb[0].mxu0
    %187 = vmatprep.mubr.f32.mxu0 0.0
    %188 = vmatmul.mubr.f32.gmra.mrb[0].mxu0 %v48
    %v189 = vpop.f32.mrb[0].mxu0
    %v190 = vadd.f32 %v96, %v189
    %v191 = vpop.f32.mrb[0].mxu0
    %192 = vmatprep.mubr.f32.mxu0 0.0
    %193 = vmatmul.mubr.f32.gmra.mrb[0].mxu0 %v49
    %v194 = vpop.f32.mrb[0].mxu0
    %v195 = vadd.f32 %v96, %v194
    %v196 = vpop.f32.mrb[0].mxu0
    %197 = vmatprep.mubr.f32.mxu0 0.0
    %198 = vmatmul.mubr.f32.gmra.mrb[0].mxu0 %v50
    %v199 = vpop.f32.mrb[0].mxu0
    %v200 = vadd.f32 %v96, %v199
    %v201 = vpop.f32.mrb[0].mxu0
    %202 = vmatprep.mubr.f32.mxu0 0.0
    %203 = vmatmul.mubr.f32.gmra.mrb[0].mxu0 %v51
    %v204 = vpop.f32.mrb[0].mxu0
    %v205 = vadd.f32 %v96, %v204
    %v206 = vpop.f32.mrb[0].mxu0
    %207 = vmatprep.mubr.f32.mxu0 0.0
    %208 = vmatmul.mubr.f32.gmra.mrb[0].mxu0 %v52
    %v209 = vpop.f32.mrb[0].mxu0
    %v210 = vadd.f32 %v96, %v209
    %v211 = vpop.f32.mrb[0].mxu0
    %212 = vmatprep.mubr.f32.mxu0 0.0
    %213 = vmatmul.mubr.f32.gmra.mrb[0].mxu0 %v53
    %v214 = vpop.f32.mrb[0].mxu0
    %v215 = vadd.f32 %v96, %v214
    %v216 = vpop.f32.mrb[0].mxu0
    %217 = vmatprep.mubr.f32.mxu0 0.0
    %218 = vmatmul.mubr.f32.gmra.mrb[0].mxu0 %v54
    %v219 = vpop.f32.mrb[0].mxu0
    %v220 = vadd.f32 %v96, %v219
    %v221 = vpop.f32.mrb[0].mxu0
    %222 = vmatprep.mubr.f32.mxu0 0.0
    %223 = vmatmul.mubr.f32.gmra.mrb[0].mxu0 %v55
    %v224 = vpop.f32.mrb[0].mxu0
    %v225 = vadd.f32 %v96, %v224
    %v226 = vpop.f32.mrb[0].mxu0
    %227 = vmatprep.mubr.f32.mxu0 0.0
    %228 = vmatmul.mubr.f32.gmra.mrb[0].mxu0 %v56
    %v229 = vpop.f32.mrb[0].mxu0
    %v230 = vadd.f32 %v96, %v229
    %v231 = vpop.f32.mrb[0].mxu0
    %232 = vmatprep.mubr.f32.mxu0 0.0
    %233 = vmatmul.mubr.f32.gmra.mrb[0].mxu0 %v57
    %v234 = vpop.f32.mrb[0].mxu0
    %v235 = vadd.f32 %v96, %v234
    %v236 = vpop.f32.mrb[0].mxu0
    %237 = vmatprep.mubr.f32.mxu0 0.0
    %238 = vmatmul.mubr.f32.gmra.mrb[0].mxu0 %v58
    %v239 = vpop.f32.mrb[0].mxu0
    %v240 = vadd.f32 %v96, %v239
    %v241 = vpop.f32.mrb[0].mxu0
    %242 = vmatprep.mubr.f32.mxu0 0.0
    %243 = vmatmul.mubr.f32.gmra.mrb[0].mxu0 %v59
    %v244 = vpop.f32.mrb[0].mxu0
    %v245 = vadd.f32 %v96, %v244
    %v246 = vpop.f32.mrb[0].mxu0
    %247 = vmatprep.mubr.f32.mxu0 0.0
    %248 = vmatmul.mubr.f32.gmra.mrb[0].mxu0 %v60
    %v249 = vpop.f32.mrb[0].mxu0
    %v250 = vadd.f32 %v96, %v249
    %v251 = vpop.f32.mrb[0].mxu0
    %252 = vmatprep.mubr.f32.mxu0 0.0
    %253 = vmatmul.mubr.f32.gmra.mrb[0].mxu0 %v61
    %v254 = vpop.f32.mrb[0].mxu0
    %v255 = vadd.f32 %v96, %v254
    %v256 = vpop.f32.mrb[0].mxu0
    %257 = vmatprep.mubr.f32.mxu0 0.0
    %258 = vmatmul.mubr.f32.gmra.mrb[0].mxu0 %v62
    %v259 = vpop.f32.mrb[0].mxu0
    %v260 = vadd.f32 %v96, %v259
    %v261 = vpop.f32.mrb[0].mxu0
    %262 = vmatprep.mubr.f32.mxu0 0.0
    %263 = vmatmul.mubr.f32.gmra.mrb[0].mxu0 %v63
    %v264 = vpop.f32.mrb[0].mxu0
    %v265 = vadd.f32 %v96, %v264
    %v266 = vpop.f32.mrb[0].mxu0
    %267 = vmatprep.mubr.f32.mxu0 0.0
    %268 = vmatmul.mubr.f32.gmra.mrb[0].mxu0 %v64
    %v269 = vpop.f32.mrb[0].mxu0
    %v270 = vadd.f32 %v96, %v269
    %v271 = vpop.f32.mrb[0].mxu0
    %272 = vmatprep.mubr.f32.mxu0 0.0
    %273 = vmatmul.mubr.f32.gmra.mrb[0].mxu0 %v65
    %v274 = vpop.f32.mrb[0].mxu0
    %v275 = vadd.f32 %v96, %v274
    %v276 = vpop.f32.mrb[0].mxu0
    %277 = vmatprep.mubr.f32.mxu0 0.0
    %278 = vmatmul.mubr.f32.gmra.mrb[0].mxu0 %v66
    %v279 = vpop.f32.mrb[0].mxu0
    %v280 = vadd.f32 %v96, %v279
    %v281 = vpop.f32.mrb[0].mxu0
    %282 = vmatprep.mubr.f32.mxu0 0.0
    %283 = vmatmul.mubr.f32.gmra.mrb[0].mxu0 %v67
    %v284 = vpop.f32.mrb[0].mxu0
    %v285 = vadd.f32 %v96, %v284
    %v286 = vpop.f32.mrb[0].mxu0
    %287 = vmatprep.mubr.f32.mxu0 0.0
    %288 = vmatmul.mubr.f32.gmra.mrb[0].mxu0 %v68
    %v289 = vpop.f32.mrb[0].mxu0
    %v290 = vadd.f32 %v96, %v289
    %v291 = vpop.f32.mrb[0].mxu0
    %292 = vmatprep.mubr.f32.mxu0 0.0
    %293 = vmatmul.mubr.f32.gmra.mrb[0].mxu0 %v69
    %v294 = vpop.f32.mrb[0].mxu0
    %v295 = vadd.f32 %v96, %v294
    %v296 = vpop.f32.mrb[0].mxu0
    %297 = vmatprep.mubr.f32.mxu0 0.0
    %298 = vmatmul.mubr.f32.gmra.mrb[0].mxu0 %v70
    %v299 = vpop.f32.mrb[0].mxu0
    %v300 = vadd.f32 %v96, %v299
    %v301 = vpop.f32.mrb[0].mxu0
    %302 = vmatprep.mubr.f32.mxu0 0.0
    %303 = vmatmul.mubr.f32.gmra.mrb[0].mxu0 %v71
    %v304 = vpop.f32.mrb[0].mxu0
    %v305 = vadd.f32 %v96, %v304
    %v306 = vpop.f32.mrb[0].mxu0
    %307 = vmatprep.mubr.f32.mxu0 0.0
    %308 = vmatmul.mubr.f32.gmra.mrb[0].mxu0 %v72
    %v309 = vpop.f32.mrb[0].mxu0
    %v310 = vadd.f32 %v96, %v309
    %v311 = vpop.f32.mrb[0].mxu0
    %312 = vmatprep.mubr.f32.mxu0 0.0
    %313 = vmatmul.mubr.f32.gmra.mrb[0].mxu0 %v73
    %v314 = vpop.f32.mrb[0].mxu0
    %v315 = vadd.f32 %v96, %v314
    %v316 = vpop.f32.mrb[0].mxu0
    %317 = vmatprep.mubr.f32.mxu0 0.0
    %318 = vmatmul.mubr.f32.gmra.mrb[0].mxu0 %v74
    %v319 = vpop.f32.mrb[0].mxu0
    %v320 = vadd.f32 %v96, %v319
    %v321 = vpop.f32.mrb[0].mxu0
    %322 = vdwg.mxu0
    %v323 = vtanh.pop %v165
    %v324 = vtanh.pop %v170
    %v325 = vtanh.pop %v175
    %v326 = vtanh.pop %v180
    %v327 = vtanh.pop %v185
    %v328 = vtanh.pop %v190
    %v329 = vtanh.pop %v195
    %v330 = vtanh.pop %v200
    %v331 = vtanh.pop %v205
    %v332 = vtanh.pop %v210
    %v333 = vtanh.pop %v215
    %v334 = vtanh.pop %v220
    %v335 = vtanh.pop %v225
    %v336 = vtanh.pop %v230
    %v337 = vtanh.pop %v235
    %v338 = vtanh.pop %v240
    %v339 = vtanh.pop %v245
    %v340 = vtanh.pop %v250
    %v341 = vtanh.pop %v255
    %v342 = vtanh.pop %v260
    %v343 = vtanh.pop %v265
    %v344 = vtanh.pop %v270
    %v345 = vtanh.pop %v275
    %v346 = vtanh.pop %v280
    %v347 = vtanh.pop %v285
    %v348 = vtanh.pop %v290
    %v349 = vtanh.pop %v295
    %v350 = vtanh.pop %v300
    %v351 = vtanh.pop %v305
    %v352 = vtanh.pop %v310
    %v353 = vtanh.pop %v315
    %v354 = vtanh.pop %v320
    %v355 = vadd.f32 %v323, %v324
    %v356 = vadd.f32 %v355, %v325
    %v357 = vadd.f32 %v356, %v326
    %v358 = vadd.f32 %v357, %v327
    %v359 = vadd.f32 %v358, %v328
    %v360 = vadd.f32 %v359, %v329
    %v361 = vadd.f32 %v360, %v330
    %v362 = vadd.f32 %v361, %v331
    %v363 = vadd.f32 %v362, %v332
    %v364 = vadd.f32 %v363, %v333
    %v365 = vadd.f32 %v364, %v334
    %v366 = vadd.f32 %v365, %v335
    %v367 = vadd.f32 %v366, %v336
    %v368 = vadd.f32 %v367, %v337
    %v369 = vadd.f32 %v368, %v338
    %v370 = vadd.f32 %v369, %v339
    %v371 = vadd.f32 %v370, %v340
    %v372 = vadd.f32 %v371, %v341
    %v373 = vadd.f32 %v372, %v342
    %v374 = vadd.f32 %v373, %v343
    %v375 = vadd.f32 %v374, %v344
    %v376 = vadd.f32 %v375, %v345
    %v377 = vadd.f32 %v376, %v346
    %v378 = vadd.f32 %v377, %v347
    %v379 = vadd.f32 %v378, %v348
    %v380 = vadd.f32 %v379, %v349
    %v381 = vadd.f32 %v380, %v350
    %v382 = vadd.f32 %v381, %v351
    %v383 = vadd.f32 %v382, %v352
    %v384 = vadd.f32 %v383, %v353
    %v385 = vadd.f32 %v384, %v354
    %v386 = vrot.slane %v385, 4
    %v387 = vadd.f32 %v385, %v386
    %v388 = vrot.slane %v387, 2
    %v389 = vadd.f32 %v387, %v388
    %v390 = vrot.slane %v389, 1
    %v391 = vadd.f32 %v389, %v390
    %392 = vst [vmem:[#allocation7] sm:$0x1] %v391
    // Predicated region
    $region22: #{tpu_custom_call.1} parent=1 // pred_check
      _
    $region23: #{tpu_custom_call.1} parent=1 // pred_check_branch
      %394 = sbr.rel (0) target = $region25
    $region24: #{tpu_custom_call.1} parent=1 // pred_region
      %s396 = ssub.s32 16, 16
      %397 = vsyncadd [#allocation4], %s396
      %s399 = sshll.u32 [#allocation7], 4
      %s400 = int_to_ptr.vmem [resolvable:$true] %s399
      %402 = dma.vmem_to_hbm [thread:$0]  %s400, 16, %s3, [#allocation4]
    $region25: #{tpu_custom_call.1} parent=1 // pred_fallthru
      _
    // Predicated region
    $region26: #{tpu_custom_call.1} parent=1 // pred_check
      _
    $region27: #{tpu_custom_call.1} parent=1 // pred_check_branch
      %404 = sbr.rel (0) target = $region29
    $region28: #{tpu_custom_call.1} parent=1 // pred_region
      %405 = dma.done [#allocation4], 16
    $region29: #{tpu_custom_call.1} parent=1 // pred_fallthru
      _
    %406 = vsyncpa [#allocation3], 1
    %407 = vsyncpa [#allocation6], 1
    %408 = vsyncpa [#allocation4], 1

</llo_original>
